<compile_context>
chip_gen: v6e
topology: v6e:2x2x1
jax: 0.10.0
libtpu: 0.0.40
codegen_flags: <defaults>
</compile_context>

<pallas_src>
import functools
import math

import jax
import jax.numpy as jnp
from jax.experimental import pallas as pl
from jax.experimental.pallas import tpu as pltpu


# --- activation registry (mirrors get_activation_fn) ------------------------
def _relu(x):
    return jnp.maximum(x, 0.0)


def _gelu(x):
    # PyTorch F.gelu default is the exact (erf) form; keep it for bit-parity.
    return 0.5 * x * (1.0 + jax.lax.erf(x * (1.0 / math.sqrt(2.0))))


def _gelu_tanh(x):
    # tanh approximation (EUP slot, ~free next to MXU work).
    return jax.nn.gelu(x, approximate=True)


def _tanh(x):
    return jnp.tanh(x)


_ACTIVATIONS = {"relu": _relu, "gelu": _gelu, "gelu_tanh": _gelu_tanh, "tanh": _tanh}


def _round_up(x, m):
    return ((x + m - 1) // m) * m


def _row_align(dtype):
    # sublane packing granularity: 8 rows for f32, 16 for bf16, 32 for int8/fp8
    itemsize = jnp.dtype(dtype).itemsize
    return max(8, 32 // max(itemsize, 1))


def _vmem_budgets():
    """Chip-aware (budget, hard_cap) for vmem sizing.

    v7x has 64 MiB/TC -> keep ~16-24 MiB headroom for Mosaic-internal scratch;
    v5e/v6e have 128 MiB -> use ~96-100 MiB.
    """
    try:
        vmem_cap = int(pltpu.get_tpu_info().vmem_capacity_bytes)
    except Exception:
        vmem_cap = 64 << 20  # conservative (v7x-sized) fallback
    hard_cap = min(vmem_cap - (8 << 20), 100 << 20)   # 56 MiB on v7x, 100 MiB on v5e/v6e
    budget = min(vmem_cap - (24 << 20), 96 << 20)     # 40 MiB on v7x,  96 MiB on v5e/v6e
    return max(budget, 16 << 20), max(hard_cap, 24 << 20)


# --- Pallas kernel -----------------------------------------------------------
def _nonlinear_head_kernel(x_ref, w1_ref, b1_ref, w2_ref, b2_ref, o_ref, *, act):
    # x_ref:  (tm, input_dim)   VMEM tile of rows
    # w1_ref: (input_dim, hidden)   b1_ref: (1, hidden)  f32
    # w2_ref: (hidden, out_dim)     b2_ref: (1, out_dim) f32
    # o_ref:  (tm, out_dim)
    #
    # Matmul operands stay in the weight dtype (bf16 weights run at the MXU
    # native rate); accumulation is f32 via preferred_element_type.
    x = x_ref[...].astype(w1_ref.dtype)
    h = jnp.dot(x, w1_ref[...], preferred_element_type=jnp.float32)
    h = act(h + b1_ref[...])
    y = jnp.dot(h.astype(w2_ref.dtype), w2_ref[...],
                preferred_element_type=jnp.float32)
    o_ref[...] = (y + b2_ref[...]).astype(o_ref.dtype)


# --- wrapper -----------------------------------------------------------------
def nonlinear_head(x, w1, b1, w2, b2, *, activation_fn="relu", tm=None,
                   matmul_dtype=None, vmem_budget_bytes=None):
    """Fused two-layer MLP head. x: [..., input_dim] -> [..., out_dim]."""
    act = _ACTIVATIONS[activation_fn]
    *lead, input_dim = x.shape
    hidden = w1.shape[1]
    out_dim = w2.shape[1]
    assert w1.shape == (input_dim, hidden)
    assert w2.shape == (hidden, out_dim)
    assert b1.shape[-1] == hidden and b2.shape[-1] == out_dim

    if matmul_dtype is not None:
        # Optional: run both matmuls with bf16 operands (f32 accumulation kept).
        w1 = w1.astype(matmul_dtype)
        w2 = w2.astype(matmul_dtype)

    n_rows = 1
    for d in lead:
        n_rows *= d
    x2d = x.reshape(n_rows, input_dim)

    # Biases pre-cast to f32 rows once here (not per grid step in the kernel).
    b1_2d = b1.reshape(1, hidden).astype(jnp.float32)
    b2_2d = b2.reshape(1, out_dim).astype(jnp.float32)

    itemsize = jnp.dtype(x.dtype).itemsize
    itemsize_w = jnp.dtype(w1.dtype).itemsize
    align = _row_align(x.dtype)

    budget, hard_cap = _vmem_budgets()
    if vmem_budget_bytes is not None:
        budget = min(vmem_budget_bytes, hard_cap)

    # Resident weights/biases are single-buffered (pl.Buffered(1)); per-row cost
    # includes double-buffered x/out tiles plus the f32 intermediates h and y.
    weight_bytes = itemsize_w * (input_dim * hidden + hidden * out_dim)
    bias_bytes = 4 * (hidden + out_dim)
    per_row_bytes = (2 * itemsize * (input_dim + out_dim)      # x/out, double-buffered
                     + 4 * (hidden + out_dim))                 # f32 h and f32 y temporaries

    if weight_bytes + bias_bytes + align * per_row_bytes > budget:
        # TODO(synk): add a hidden-dim-tiled fallback (extra "arbitrary" grid axis
        # + f32 acc scratch) for MLP heads whose weights exceed resident VMEM.
        raise ValueError(
            f"NonLinearHead weights ({weight_bytes + bias_bytes} B) do not fit the "
            f"VMEM budget ({budget} B); hidden-dim tiling is not implemented.")

    tm_cap = (budget - weight_bytes - bias_bytes) // per_row_bytes
    tm_cap = max(align, (tm_cap // align) * align)
    target = tm if tm is not None else 8192        # large default: amortize ~0.35us/step
    tm_eff = min(max(target, align), tm_cap, _round_up(n_rows, align))
    tm_eff = max(align, (tm_eff // align) * align)

    tile_bytes = tm_eff * per_row_bytes
    est_bytes = weight_bytes + bias_bytes + tile_bytes
    vmem_limit = int(min(max(est_bytes + (8 << 20), 32 << 20), hard_cap))

    grid = (pl.cdiv(n_rows, tm_eff),)  # partial last block handled by Pallas
    kernel = functools.partial(_nonlinear_head_kernel, act=act)

    # Grid-invariant operands: single buffer (never re-fetched across the grid).
    const_mode = pl.Buffered(1)

    out = pl.pallas_call(
        kernel,
        out_shape=jax.ShapeDtypeStruct((n_rows, out_dim), x.dtype),
        grid_spec=pltpu.PrefetchScalarGridSpec(
            num_scalar_prefetch=0,
            grid=grid,
            in_specs=[
                pl.BlockSpec((tm_eff, input_dim), lambda i: (i, 0)),      # x row tile
                pl.BlockSpec((input_dim, hidden), lambda i: (0, 0),
                             pipeline_mode=const_mode),                   # w1 (resident)
                pl.BlockSpec((1, hidden), lambda i: (0, 0),
                             pipeline_mode=const_mode),                   # b1 (f32)
                pl.BlockSpec((hidden, out_dim), lambda i: (0, 0),
                             pipeline_mode=const_mode),                   # w2 (resident)
                pl.BlockSpec((1, out_dim), lambda i: (0, 0),
                             pipeline_mode=const_mode),                   # b2 (f32)
            ],
            # Native out_dim block: no padding / post-slice, so no extra HBM pass
            # (masked stores when out_dim % 128 != 0 cost less than 8x writeback).
            out_specs=pl.BlockSpec((tm_eff, out_dim), lambda i: (i, 0)),
        ),
        compiler_params=pltpu.CompilerParams(
            # "parallel" lets the row axis shard across v7x's two TensorCores.
            dimension_semantics=("parallel",),
            vmem_limit_bytes=vmem_limit,
        ),
    )(x2d, w1, b1_2d, w2, b2_2d)

    return out.reshape(*lead, out_dim)


# --- parameter init (deterministic, PyTorch nn.Linear-style uniform) ---------
def init_params(key, input_dim, hidden, out_dim, dtype=jnp.float32):
    k1, k2, k3, k4 = jax.random.split(key, 4)
    bound1 = 1.0 / math.sqrt(input_dim)
    bound2 = 1.0 / math.sqrt(hidden)
    # stored as [in, out] (transposed from PyTorch's [out, in])
    w1 = jax.random.uniform(k1, (input_dim, hidden), dtype, -bound1, bound1)
    b1 = jax.random.uniform(k2, (hidden,), dtype, -bound1, bound1)
    w2 = jax.random.uniform(k3, (hidden, out_dim), dtype, -bound2, bound2)
    b2 = jax.random.uniform(k4, (out_dim,), dtype, -bound2, bound2)
    return w1, b1, w2, b2


if __name__ == "__main__":
    # NonLinearHead(input_dim=32, out_dim=16, activation_fn=..., hidden=None->32)
    batch, seq = 2, 8
    input_dim, hidden, out_dim = 32, 32, 16

    key = jax.random.PRNGKey(0)
    kx, kp = jax.random.split(key)
    x = jax.random.normal(kx, (batch, seq, input_dim), jnp.float32)
    w1, b1, w2, b2 = init_params(kp, input_dim, hidden, out_dim)

    x2d = x.reshape(batch * seq, input_dim)
    ok = True
    for act_name in ("relu", "tanh"):
        out = nonlinear_head(x, w1, b1, w2, b2, activation_fn=act_name)
        out = jax.block_until_ready(out)
        assert out.shape == (batch, seq, out_dim)
        ref = _ACTIVATIONS[act_name](x2d @ w1 + b1) @ w2 + b2
        ok &= bool(jnp.allclose(out.reshape(-1, out_dim), ref, atol=1e-5, rtol=1e-5))

    assert ok
    print("KERNEL_OK")
</pallas_src>

<mosaic_0001>
module attributes {stable_mosaic.version = 11 : i64} {
  func.func @_nonlinear_head_kernel(%arg0: i32, %arg1: memref<16x32xf32, #tpu.memory_space<vmem>>, %arg2: memref<32x32xf32, #tpu.memory_space<vmem>>, %arg3: memref<1x32xf32, #tpu.memory_space<vmem>>, %arg4: memref<32x16xf32, #tpu.memory_space<vmem>>, %arg5: memref<1x16xf32, #tpu.memory_space<vmem>>, %arg6: memref<16x16xf32, #tpu.memory_space<vmem>>) attributes {dimension_semantics = [#tpu.dimension_semantics<parallel>], iteration_bounds = array<i64: 1>, scalar_prefetch = 0 : i64, scratch_operands = 0 : i64, tpu.core_type = #tpu.core_type<tc>, window_params = [{transform_indices = @transform_0, window_bounds = array<i64: 16, 32>}, {pipeline_mode = #tpu.pipeline_mode<synchronous>, transform_indices = @transform_1, window_bounds = array<i64: 32, 32>}, {pipeline_mode = #tpu.pipeline_mode<synchronous>, transform_indices = @transform_2, window_bounds = array<i64: 1, 32>}, {pipeline_mode = #tpu.pipeline_mode<synchronous>, transform_indices = @transform_3, window_bounds = array<i64: 32, 16>}, {pipeline_mode = #tpu.pipeline_mode<synchronous>, transform_indices = @transform_4, window_bounds = array<i64: 1, 16>}, {transform_indices = @transform_5, window_bounds = array<i64: 16, 16>}]} {
    %c0 = arith.constant 0 : index
    %c0_0 = arith.constant 0 : index
    %0 = vector.load %arg1[%c0, %c0_0] : memref<16x32xf32, #tpu.memory_space<vmem>>, vector<16x32xf32>
    %c0_1 = arith.constant 0 : index
    %c0_2 = arith.constant 0 : index
    %1 = vector.load %arg2[%c0_1, %c0_2] : memref<32x32xf32, #tpu.memory_space<vmem>>, vector<32x32xf32>
    %cst = arith.constant dense<0.000000e+00> : vector<16x32xf32>
    %2 = tpu.matmul %0, %1, %cst {dimension_numbers = #tpu.dot_dimension_numbers<[1], [0], [0], [1], [0, 0, 1, 1], [], []>} : vector<16x32xf32>, vector<32x32xf32>, vector<16x32xf32> -> vector<16x32xf32>
    %c0_3 = arith.constant 0 : index
    %c0_4 = arith.constant 0 : index
    %3 = vector.load %arg3[%c0_3, %c0_4] : memref<1x32xf32, #tpu.memory_space<vmem>>, vector<1x32xf32>
    %4 = vector.broadcast %3 : vector<1x32xf32> to vector<16x32xf32>
    %5 = arith.addf %2, %4 : vector<16x32xf32>
    %cst_5 = arith.constant 0.000000e+00 : f32
    %6 = vector.broadcast %cst_5 : f32 to vector<16x32xf32>
    %7 = arith.maximumf %5, %6 : vector<16x32xf32>
    %c0_6 = arith.constant 0 : index
    %c0_7 = arith.constant 0 : index
    %8 = vector.load %arg4[%c0_6, %c0_7] : memref<32x16xf32, #tpu.memory_space<vmem>>, vector<32x16xf32>
    %cst_8 = arith.constant dense<0.000000e+00> : vector<16x16xf32>
    %9 = tpu.matmul %7, %8, %cst_8 {dimension_numbers = #tpu.dot_dimension_numbers<[1], [0], [0], [1], [0, 0, 1, 1], [], []>} : vector<16x32xf32>, vector<32x16xf32>, vector<16x16xf32> -> vector<16x16xf32>
    %c0_9 = arith.constant 0 : index
    %c0_10 = arith.constant 0 : index
    %10 = vector.load %arg5[%c0_9, %c0_10] : memref<1x16xf32, #tpu.memory_space<vmem>>, vector<1x16xf32>
    %11 = vector.broadcast %10 : vector<1x16xf32> to vector<16x16xf32>
    %12 = arith.addf %9, %11 : vector<16x16xf32>
    %c0_11 = arith.constant 0 : index
    %c0_12 = arith.constant 0 : index
    %13 = vector.load %arg6[%c0_11, %c0_12] : memref<16x16xf32, #tpu.memory_space<vmem>>, vector<16x16xf32>
    tpu.vector_store %arg6[%c0_11, %c0_12], %12 {strides = array<i32>} : memref<16x16xf32, #tpu.memory_space<vmem>>, vector<16x16xf32>,
    return
  }
  func.func @transform_0(%arg0: i32) -> (i32, i32) {
    %c0_i32 = arith.constant 0 : i32
    %c0_i32_0 = arith.constant 0 : i32
    return %arg0, %c0_i32 : i32, i32
  }
  func.func @transform_1(%arg0: i32) -> (i32, i32) {
    %c0_i32 = arith.constant 0 : i32
    %c0_i32_0 = arith.constant 0 : i32
    %c0_i32_1 = arith.constant 0 : i32
    return %c0_i32, %c0_i32_0 : i32, i32
  }
  func.func @transform_2(%arg0: i32) -> (i32, i32) {
    %c0_i32 = arith.constant 0 : i32
    %c0_i32_0 = arith.constant 0 : i32
    %c0_i32_1 = arith.constant 0 : i32
    return %c0_i32, %c0_i32_0 : i32, i32
  }
  func.func @transform_3(%arg0: i32) -> (i32, i32) {
    %c0_i32 = arith.constant 0 : i32
    %c0_i32_0 = arith.constant 0 : i32
    %c0_i32_1 = arith.constant 0 : i32
    return %c0_i32, %c0_i32_0 : i32, i32
  }
  func.func @transform_4(%arg0: i32) -> (i32, i32) {
    %c0_i32 = arith.constant 0 : i32
    %c0_i32_0 = arith.constant 0 : i32
    %c0_i32_1 = arith.constant 0 : i32
    return %c0_i32, %c0_i32_0 : i32, i32
  }
  func.func @transform_5(%arg0: i32) -> (i32, i32) {
    %c0_i32 = arith.constant 0 : i32
    %c0_i32_0 = arith.constant 0 : i32
    return %arg0, %c0_i32 : i32, i32
  }
}

</mosaic_0001>

<llo_original>
// kernel: tpu_custom_call.1
$region0: #{tpu_custom_call.1}
  #allocation0 [shape = 'u32[]', space=smem, size = 0x4, offset = 0x4, fixed_abs, tag = 'smem constant byte address 0x4 - core index']
  #allocation1 [shape = 'u32[144,128]{1,0:T(1,128)}', space=vmem, size = 0x12000, scoped, tag = 'internal scratch']
  %s0 = inlined_call_operand.vmem [shape: f32[16,32], index: 0, kind: input, shape index: {}]
  %s1 = inlined_call_operand.vmem [shape: f32[32,32], index: 1, kind: input, shape index: {}]
  %s2 = inlined_call_operand.vmem [shape: f32[1,32], index: 2, kind: input, shape index: {}]
  %s3 = inlined_call_operand.vmem [shape: f32[32,16], index: 3, kind: input, shape index: {}]
  %s4 = inlined_call_operand.vmem [shape: f32[1,16], index: 4, kind: input, shape index: {}]
  %s5 = inlined_call_operand.hbm [shape: f32[16,16], index: 5, kind: output, shape index: {}]
  %s6 = sld [smem:[#allocation0]]
  $region30: #{tpu_custom_call.1} parent=0
    _
  %s8 = ssub.s32 1, %s6
  %s9 = scalar_select 0, %s8, %s6
  $region1: #{tpu_custom_call.1} parent=0
    #allocation2 [shape = 'u8[8192]{0}', space=vmem, size = 0x2000, scoped, tag = 'output window, operand 0, single buffered']
    #allocation3 [shape = 's32[1]{0}', space=sflag, size = 0x4, scoped, tag = 'scoped memory for tpu_custom_call.1']
    %10 = vsyncpa [#allocation3], 0
    // Predicated region
    $region2: #{tpu_custom_call.1} parent=1 // pred_check
      _
    $region3: #{tpu_custom_call.1} parent=1 // pred_check_branch
      %12 = sbr.rel (0) target = $region5
    $region4: #{tpu_custom_call.1} parent=1 // pred_region
      _
    $region5: #{tpu_custom_call.1} parent=1 // pred_fallthru
      _
    // Predicated region
    $region6: #{tpu_custom_call.1} parent=1 // pred_check
      _
    $region7: #{tpu_custom_call.1} parent=1 // pred_check_branch
      %14 = sbr.rel (0) target = $region9
    $region8: #{tpu_custom_call.1} parent=1 // pred_region
      _
    $region9: #{tpu_custom_call.1} parent=1 // pred_fallthru
      _
    // Predicated region
    $region10: #{tpu_custom_call.1} parent=1 // pred_check
      _
    $region11: #{tpu_custom_call.1} parent=1 // pred_check_branch
      %16 = sbr.rel (0) target = $region13
    $region12: #{tpu_custom_call.1} parent=1 // pred_region
      _
    $region13: #{tpu_custom_call.1} parent=1 // pred_fallthru
      _
    // Predicated region
    $region14: #{tpu_custom_call.1} parent=1 // pred_check
      _
    $region15: #{tpu_custom_call.1} parent=1 // pred_check_branch
      %18 = sbr.rel (0) target = $region17
    $region16: #{tpu_custom_call.1} parent=1 // pred_region
      _
    $region17: #{tpu_custom_call.1} parent=1 // pred_fallthru
      _
    // Predicated region
    $region18: #{tpu_custom_call.1} parent=1 // pred_check
      _
    $region19: #{tpu_custom_call.1} parent=1 // pred_check_branch
      %20 = sbr.rel (0) target = $region21
    $region20: #{tpu_custom_call.1} parent=1 // pred_region
      _
    $region21: #{tpu_custom_call.1} parent=1 // pred_fallthru
      _
    %v21 = vld [vmem:[%s0] sm:$0xff]
    %v22 = vld [vmem:[%s0 + $0x8] sm:$0xff]
    %v23 = vld [vmem:[%s1] sm:$0xff]
    %v24 = vld [vmem:[%s1 + $0x8] sm:$0xff]
    %v25 = vld [vmem:[%s1 + $0x10] sm:$0xff]
    %v26 = vld [vmem:[%s1 + $0x18] sm:$0xff]
    %v27 = vld [vmem:[%s2] sm:$0x1]
    %v29 = vlaneseq
    %v30 = vshrl.u32 %v29, 7
    %v31 = vsub.s32 0, %v30
    %v32 = vrot.slane %v27, %v31
    %vm34 = vcmask 261120
    %v36 = vsel %vm34, %v21, 0
    %v39 = vsel %vm34, %v22, 0
    %41 = vmatprep.subr.mxu0 0.0
    %42 = vmatpush1.msra.mxu0 0.0
    %43 = vmatprep.subr.mxu0 0.0
    %44 = vmatpush1.msra.mxu0 0.0
    %45 = vmatprep.subr.mxu0 0.0
    %46 = vmatpush1.msra.mxu0 0.0
    %47 = vmatprep.subr.mxu0 0.0
    %48 = vmatpush1.msra.mxu0 0.0
    %49 = vmatprep.subr.mxu0 0.0
    %50 = vmatpush1.msra.mxu0 0.0
    %51 = vmatprep.subr.mxu0 0.0
    %52 = vmatpush1.msra.mxu0 0.0
    %53 = vmatprep.subr.mxu0 0.0
    %54 = vmatpush1.msra.mxu0 0.0
    %55 = vmatprep.subr.mxu0 0.0
    %56 = vmatpush1.msra.mxu0 0.0
    %57 = vmatprep.subr.mxu0 0.0
    %58 = vmatpush1.msra.mxu0 0.0
    %59 = vmatprep.subr.mxu0 0.0
    %60 = vmatpush1.msra.mxu0 0.0
    %61 = vmatprep.subr.mxu0 0.0
    %62 = vmatpush1.msra.mxu0 0.0
    %63 = vmatprep.subr.mxu0 0.0
    %64 = vmatpush1.msra.mxu0 0.0
    %65 = vmatprep.subr.mxu0 0.0
    %66 = vmatpush1.msra.mxu0 %v26
    %67 = vmatprep.subr.mxu0 0.0
    %68 = vmatpush1.msra.mxu0 %v25
    %69 = vmatprep.subr.mxu0 0.0
    %70 = vmatpush1.msra.mxu0 %v24
    %71 = vmatprep.subr.mxu0 0.0
    %72 = vmatpush1.msra.mxu0 %v23
    %73 = vmatprep.subr.mxu0 0.0
    %74 = vmatpush2.msra.mxu0 0.0
    %75 = vmatprep.subr.mxu0 0.0
    %76 = vmatpush2.msra.mxu0 0.0
    %77 = vmatprep.subr.mxu0 0.0
    %78 = vmatpush2.msra.mxu0 0.0
    %79 = vmatprep.subr.mxu0 0.0
    %80 = vmatpush2.msra.mxu0 0.0
    %81 = vmatprep.subr.mxu0 0.0
    %82 = vmatpush2.msra.mxu0 0.0
    %83 = vmatprep.subr.mxu0 0.0
    %84 = vmatpush2.msra.mxu0 0.0
    %85 = vmatprep.subr.mxu0 0.0
    %86 = vmatpush2.msra.mxu0 0.0
    %87 = vmatprep.subr.mxu0 0.0
    %88 = vmatpush2.msra.mxu0 0.0
    %89 = vmatprep.subr.mxu0 0.0
    %90 = vmatpush2.msra.mxu0 0.0
    %91 = vmatprep.subr.mxu0 0.0
    %92 = vmatpush2.msra.mxu0 0.0
    %93 = vmatprep.subr.mxu0 0.0
    %94 = vmatpush2.msra.mxu0 0.0
    %95 = vmatprep.subr.mxu0 0.0
    %96 = vmatpush2.msra.mxu0 0.0
    %97 = vmatprep.subr.mxu0 0.0
    %98 = vmatpush2.msra.mxu0 0.0
    %99 = vmatprep.subr.mxu0 0.0
    %100 = vmatpush2.msra.mxu0 0.0
    %101 = vmatprep.subr.mxu0 0.0
    %102 = vmatpush2.msra.mxu0 0.0
    %103 = vmatprep.subr.mxu0 0.0
    %104 = vmatpush2.msra.mxu0 0.0
    %105 = vmatprep.mubr.f32.mxu0 0.0
    %106 = vmatmul.mubr.f32.gmra.mxu0 %v36
    %v107 = vpop.f32.mrf.mxu0
    %v108 = vadd.f32 %v32, %v107
    %v109 = vpop.f32.mrf.mxu0
    %110 = vmatprep.mubr.f32.mxu0 0.0
    %111 = vmatmul.mubr.f32.gmra.mxu0 %v39
    %v112 = vpop.f32.mrf.mxu0
    %v113 = vadd.f32 %v32, %v112
    %v114 = vpop.f32.mrf.mxu0
    %115 = vdwg.mxu0
    %v116 = vmax.f32 %v108, 0.0
    %v117 = vmax.f32 %v113, 0.0
    %v118 = vld [vmem:[%s3] sm:$0xff]
    %v119 = vld [vmem:[%s3 + $0x8] sm:$0xff]
    %v120 = vld [vmem:[%s3 + $0x10] sm:$0xff]
    %v121 = vld [vmem:[%s3 + $0x18] sm:$0xff]
    %v122 = vld [vmem:[%s4] sm:$0x1]
    %v124 = vlaneseq
    %v125 = vshrl.u32 %v124, 7
    %v126 = vsub.s32 0, %v125
    %v127 = vrot.slane %v122, %v126
    %v130 = vsel %vm34, %v116, 0
    %v133 = vsel %vm34, %v117, 0
    %135 = vmatprep.subr.mxu0 0.0
    %136 = vmatpush1.msra.mxu0 0.0
    %137 = vmatprep.subr.mxu0 0.0
    %138 = vmatpush1.msra.mxu0 0.0
    %139 = vmatprep.subr.mxu0 0.0
    %140 = vmatpush1.msra.mxu0 0.0
    %141 = vmatprep.subr.mxu0 0.0
    %142 = vmatpush1.msra.mxu0 0.0
    %143 = vmatprep.subr.mxu0 0.0
    %144 = vmatpush1.msra.mxu0 0.0
    %145 = vmatprep.subr.mxu0 0.0
    %146 = vmatpush1.msra.mxu0 0.0
    %147 = vmatprep.subr.mxu0 0.0
    %148 = vmatpush1.msra.mxu0 0.0
    %149 = vmatprep.subr.mxu0 0.0
    %150 = vmatpush1.msra.mxu0 0.0
    %151 = vmatprep.subr.mxu0 0.0
    %152 = vmatpush1.msra.mxu0 0.0
    %153 = vmatprep.subr.mxu0 0.0
    %154 = vmatpush1.msra.mxu0 0.0
    %155 = vmatprep.subr.mxu0 0.0
    %156 = vmatpush1.msra.mxu0 0.0
    %157 = vmatprep.subr.mxu0 0.0
    %158 = vmatpush1.msra.mxu0 0.0
    %159 = vmatprep.subr.mxu0 0.0
    %160 = vmatpush1.msra.mxu0 %v121
    %161 = vmatprep.subr.mxu0 0.0
    %162 = vmatpush1.msra.mxu0 %v120
    %163 = vmatprep.subr.mxu0 0.0
    %164 = vmatpush1.msra.mxu0 %v119
    %165 = vmatprep.subr.mxu0 0.0
    %166 = vmatpush1.msra.mxu0 %v118
    %167 = vmatprep.subr.mxu0 0.0
    %168 = vmatpush2.msra.mxu0 0.0
    %169 = vmatprep.subr.mxu0 0.0
    %170 = vmatpush2.msra.mxu0 0.0
    %171 = vmatprep.subr.mxu0 0.0
    %172 = vmatpush2.msra.mxu0 0.0
    %173 = vmatprep.subr.mxu0 0.0
    %174 = vmatpush2.msra.mxu0 0.0
    %175 = vmatprep.subr.mxu0 0.0
    %176 = vmatpush2.msra.mxu0 0.0
    %177 = vmatprep.subr.mxu0 0.0
    %178 = vmatpush2.msra.mxu0 0.0
    %179 = vmatprep.subr.mxu0 0.0
    %180 = vmatpush2.msra.mxu0 0.0
    %181 = vmatprep.subr.mxu0 0.0
    %182 = vmatpush2.msra.mxu0 0.0
    %183 = vmatprep.subr.mxu0 0.0
    %184 = vmatpush2.msra.mxu0 0.0
    %185 = vmatprep.subr.mxu0 0.0
    %186 = vmatpush2.msra.mxu0 0.0
    %187 = vmatprep.subr.mxu0 0.0
    %188 = vmatpush2.msra.mxu0 0.0
    %189 = vmatprep.subr.mxu0 0.0
    %190 = vmatpush2.msra.mxu0 0.0
    %191 = vmatprep.subr.mxu0 0.0
    %192 = vmatpush2.msra.mxu0 0.0
    %193 = vmatprep.subr.mxu0 0.0
    %194 = vmatpush2.msra.mxu0 0.0
    %195 = vmatprep.subr.mxu0 0.0
    %196 = vmatpush2.msra.mxu0 0.0
    %197 = vmatprep.subr.mxu0 0.0
    %198 = vmatpush2.msra.mxu0 0.0
    %199 = vmatprep.mubr.f32.mxu0 0.0
    %200 = vmatmul.mubr.f32.gmra.mxu0 %v130
    %v201 = vpop.f32.mrf.mxu0
    %v202 = vadd.f32 %v127, %v201
    %v203 = vpop.f32.mrf.mxu0
    %204 = vmatprep.mubr.f32.mxu0 0.0
    %205 = vmatmul.mubr.f32.gmra.mxu0 %v133
    %v206 = vpop.f32.mrf.mxu0
    %v207 = vadd.f32 %v127, %v206
    %v208 = vpop.f32.mrf.mxu0
    %209 = vdwg.mxu0
    %vm210 = vcmask 130048
    %211 = vst.msk [vmem:[#allocation2] sm:$0xff] %vm210, %v202
    %212 = vst.msk [vmem:[#allocation2 + $0x8] sm:$0xff] %vm210, %v207
    // Predicated region
    $region22: #{tpu_custom_call.1} parent=1 // pred_check
      _
    $region23: #{tpu_custom_call.1} parent=1 // pred_check_branch
      %214 = sbr.rel (0) target = $region25
    $region24: #{tpu_custom_call.1} parent=1 // pred_region
      %s216 = ssub.s32 256, 256
      %217 = vsyncadd [#allocation3], %s216
      %s218 = sshll.u32 [#allocation2], 4
      %s219 = int_to_ptr.vmem [resolvable:$true] %s218
      %224 = dma.vmem_to_hbm [thread:$0]  %s219, 256, %s5, [#allocation3], 128, 128, 8
    $region25: #{tpu_custom_call.1} parent=1 // pred_fallthru
      _
    // Predicated region
    $region26: #{tpu_custom_call.1} parent=1 // pred_check
      _
    $region27: #{tpu_custom_call.1} parent=1 // pred_check_branch
      %226 = sbr.rel (0) target = $region29
    $region28: #{tpu_custom_call.1} parent=1 // pred_region
      %227 = dma.done [#allocation3], 256
    $region29: #{tpu_custom_call.1} parent=1 // pred_fallthru
      _
    %228 = vsyncpa [#allocation3], 1

</llo_original>
